<compile_context>
chip_gen: v6e
topology: v6e:2x2x1
jax: 0.10.0
libtpu: 0.0.40
codegen_flags: <defaults>
</compile_context>

<pallas_src>
import functools

import jax
import jax.numpy as jnp
from jax import lax
from jax.experimental import pallas as pl
from jax.experimental.pallas import tpu as pltpu


def _round_up(x, m):
    return (x + m - 1) // m * m


# Contract the last dim of both operands: (i,k)x(j,k) -> (i,j).
_DN_LAST = (((1,), (1,)), ((), ()))

# Explicit scoped-VMEM budget; safe on v5e/v6e (128 MiB) and v7x (64 MiB).
_VMEM_LIMIT = 48 * 1024 * 1024


# ---------------------------------------------------------------------------
# Kernel 1: fused QKV projection.  Each seq tile / weight is touched once.
# ---------------------------------------------------------------------------
def _qkv_proj_kernel(x_ref, wq_ref, wk_ref, wv_ref, q_ref, k_ref, v_ref, *, scale):
    x = x_ref[...]                                                # (T, Dinp) bf16
    q = jnp.dot(x, wq_ref[...], preferred_element_type=jnp.float32)
    q_ref[...] = (q * scale).astype(q_ref.dtype)                  # scale folded into Q
    k_ref[...] = jnp.dot(x, wk_ref[...],
                         preferred_element_type=jnp.float32).astype(k_ref.dtype)
    v_ref[...] = jnp.dot(x, wv_ref[...],
                         preferred_element_type=jnp.float32).astype(v_ref.dtype)


# ---------------------------------------------------------------------------
# Kernel 2: flash-style attention over precomputed (pre-scaled) Q, K, V.
# ---------------------------------------------------------------------------
def _flash_attn_kernel(*refs, needs_mask):
    if needs_mask:
        mask_ref, q_ref, k_ref, v_ref, o_ref, m_sc, l_sc, acc_sc = refs
    else:
        q_ref, k_ref, v_ref, o_ref, m_sc, l_sc, acc_sc = refs

    ki = pl.program_id(1)

    @pl.when(ki == 0)
    def _init():
        m_sc[...] = jnp.full_like(m_sc, -jnp.inf)
        l_sc[...] = jnp.zeros_like(l_sc)
        acc_sc[...] = jnp.zeros_like(acc_sc)

    # scores = (Q*scale) @ K^T, contracting the head dim of both (no k.T copy).
    s = lax.dot_general(q_ref[...], k_ref[...], _DN_LAST,
                        preferred_element_type=jnp.float32)       # (TQ, TK) f32

    if needs_mask:  # static: only traced when seq was padded
        s = s + mask_ref[...]                                     # (1, TK) 0 / -inf

    # Online softmax (all f32).
    m_prev = m_sc[...]
    m_new = jnp.maximum(m_prev, jnp.max(s, axis=-1, keepdims=True))
    alpha = jnp.exp(m_prev - m_new)
    p = jnp.exp(s - m_new)
    l_sc[...] = alpha * l_sc[...] + jnp.sum(p, axis=-1, keepdims=True)
    acc_sc[...] = alpha * acc_sc[...] + jnp.dot(
        p.astype(jnp.bfloat16), v_ref[...], preferred_element_type=jnp.float32)
    m_sc[...] = m_new

    @pl.when(ki == pl.num_programs(1) - 1)
    def _finalize():
        o_ref[...] = (acc_sc[...] *
                      pl.reciprocal(l_sc[...], approx=True)).astype(o_ref.dtype)


def self_attention_v2(x, w_query, w_key, w_value):
    """x: (seq, d_in).  w_*: (d_out, d_in) — PyTorch nn.Linear weight layout."""
    seq, d_in = x.shape
    d_out = w_query.shape[0]
    out_dtype = x.dtype

    # Tile sizes.  TQ=512 is a valid bump on v6e's 128 MiB VMEM; keep 256 so
    # the same budget also fits v7x's 64 MiB without re-derivation.
    tq = tk = min(256, _round_up(seq, 8))
    seq_pad = _round_up(seq, tq)
    d_in_pad = _round_up(d_in, 128)        # lane-dense x/W loads, full MXU K dim
    d_out_pad = _round_up(d_out, 128)      # lane-dense output, full MXU N dim
    needs_mask = seq_pad != seq

    # bf16 MXU operands; zero-pad seq and d_in of x.
    x_p = jnp.pad(x.astype(jnp.bfloat16),
                  ((0, seq_pad - seq), (0, d_in_pad - d_in)))

    def prep_w(w):
        # (d_out, d_in) -> (d_in_pad, d_out_pad): one free wrapper transpose so
        # every in-kernel matmul is canonical (M,K)x(K,N).
        return jnp.pad(w.T.astype(jnp.bfloat16),
                       ((0, d_in_pad - d_in), (0, d_out_pad - d_out)))

    wq_p, wk_p, wv_p = prep_w(w_query), prep_w(w_key), prep_w(w_value)

    n_seq = seq_pad // tq

    # ---- projection pass: Q (pre-scaled), K, V in bf16, each computed once --
    proj_kernel = functools.partial(_qkv_proj_kernel,
                                    scale=1.0 / float(d_out) ** 0.5)
    qkv_shape = jax.ShapeDtypeStruct((seq_pad, d_out_pad), jnp.bfloat16)
    w_spec = pl.BlockSpec((d_in_pad, d_out_pad), lambda i: (0, 0))
    seq_spec = pl.BlockSpec((tq, d_out_pad), lambda i: (i, 0))
    proj_cost = pl.CostEstimate(
        flops=int(2 * seq_pad * d_in_pad * d_out_pad * 3),
        transcendentals=0,
        bytes_accessed=int(2 * (seq_pad * d_in_pad + 3 * d_in_pad * d_out_pad
                                + 3 * seq_pad * d_out_pad)))
    q, k, v = pl.pallas_call(
        proj_kernel,
        out_shape=(qkv_shape, qkv_shape, qkv_shape),
        grid=(n_seq,),
        in_specs=[pl.BlockSpec((tq, d_in_pad), lambda i: (i, 0)),
                  w_spec, w_spec, w_spec],
        out_specs=(seq_spec, seq_spec, seq_spec),
        compiler_params=pltpu.CompilerParams(
            dimension_semantics=("parallel",),
            vmem_limit_bytes=_VMEM_LIMIT),
        cost_estimate=proj_cost,
    )(x_p, wq_p, wk_p, wv_p)

    # ---- flash attention pass ----------------------------------------------
    attn_kernel = functools.partial(_flash_attn_kernel, needs_mask=needs_mask)

    q_spec = pl.BlockSpec((tq, d_out_pad), lambda qi, ki: (qi, 0))
    kv_spec = pl.BlockSpec((tk, d_out_pad), lambda qi, ki: (ki, 0))
    in_specs = [q_spec, kv_spec, kv_spec]
    inputs = [q, k, v]
    if needs_mask:
        mask = jnp.where(jnp.arange(seq_pad) < seq, 0.0, -jnp.inf)
        mask = mask.astype(jnp.float32).reshape(1, seq_pad)
        in_specs = [pl.BlockSpec((1, tk), lambda qi, ki: (0, ki))] + in_specs
        inputs = [mask] + inputs

    n_q = seq_pad // tq
    n_kv = seq_pad // tk
    attn_cost = pl.CostEstimate(
        flops=int(4 * seq_pad * seq_pad * d_out_pad),
        transcendentals=int(seq_pad * seq_pad),
        bytes_accessed=int(2 * seq_pad * d_out_pad * (1 + 2 * n_q)
                           + seq_pad * d_out_pad * out_dtype.itemsize))

    out = pl.pallas_call(
        attn_kernel,
        out_shape=jax.ShapeDtypeStruct((seq_pad, d_out_pad), out_dtype),
        grid=(n_q, n_kv),
        in_specs=in_specs,
        out_specs=pl.BlockSpec((tq, d_out_pad), lambda qi, ki: (qi, 0)),
        scratch_shapes=[
            pltpu.VMEM((tq, 1), jnp.float32),          # running max m
            pltpu.VMEM((tq, 1), jnp.float32),          # running denom l
            pltpu.VMEM((tq, d_out_pad), jnp.float32),  # output accumulator
        ],
        compiler_params=pltpu.CompilerParams(
            dimension_semantics=("parallel", "arbitrary"),
            vmem_limit_bytes=_VMEM_LIMIT),
        cost_estimate=attn_cost,
    )(*inputs)

    return out[:seq, :d_out]


def _reference(x, w_query, w_key, w_value):
    # Plain-JAX reference mirroring the PyTorch forward exactly (f32).
    keys = x @ w_key.T
    queries = x @ w_query.T
    values = x @ w_value.T
    attn_scores = queries @ keys.T
    attn_weights = jax.nn.softmax(attn_scores / (keys.shape[-1] ** 0.5), axis=-1)
    return attn_weights @ values


if __name__ == "__main__":
    key = jax.random.PRNGKey(0)
    k_x, k_q, k_k, k_v = jax.random.split(key, 4)

    seq, d_in, d_out = 8, 32, 16  # qkv_bias=False (module default)

    x = jax.random.normal(k_x, (seq, d_in), dtype=jnp.float32)
    bound = 1.0 / (d_in ** 0.5)
    w_query = jax.random.uniform(k_q, (d_out, d_in), jnp.float32, -bound, bound)
    w_key = jax.random.uniform(k_k, (d_out, d_in), jnp.float32, -bound, bound)
    w_value = jax.random.uniform(k_v, (d_out, d_in), jnp.float32, -bound, bound)

    out = self_attention_v2(x, w_query, w_key, w_value)
    out = jax.block_until_ready(out)

    ref = _reference(x, w_query, w_key, w_value)
    assert out.shape == (seq, d_out), out.shape
    # bf16 MXU operands + approx reciprocal -> relaxed tolerance vs f32 reference.
    assert jnp.allclose(out, ref, atol=3e-2, rtol=3e-2), "mismatch vs reference"

    print("KERNEL_OK")
</pallas_src>

<mosaic_0001>
module attributes {stable_mosaic.version = 11 : i64} {
  func.func @_qkv_proj_kernel(%arg0: i32, %arg1: memref<8x128xbf16, #tpu.memory_space<vmem>>, %arg2: memref<128x128xbf16, #tpu.memory_space<vmem>>, %arg3: memref<128x128xbf16, #tpu.memory_space<vmem>>, %arg4: memref<128x128xbf16, #tpu.memory_space<vmem>>, %arg5: memref<8x128xbf16, #tpu.memory_space<vmem>>, %arg6: memref<8x128xbf16, #tpu.memory_space<vmem>>, %arg7: memref<8x128xbf16, #tpu.memory_space<vmem>>) attributes {dimension_semantics = [#tpu.dimension_semantics<parallel>], iteration_bounds = array<i64: 1>, scalar_prefetch = 0 : i64, scratch_operands = 0 : i64, tpu.core_type = #tpu.core_type<tc>, window_params = [{transform_indices = @transform_0, window_bounds = array<i64: 8, 128>}, {pipeline_mode = #tpu.pipeline_mode<synchronous>, transform_indices = @transform_1, window_bounds = array<i64: 128, 128>}, {pipeline_mode = #tpu.pipeline_mode<synchronous>, transform_indices = @transform_2, window_bounds = array<i64: 128, 128>}, {pipeline_mode = #tpu.pipeline_mode<synchronous>, transform_indices = @transform_3, window_bounds = array<i64: 128, 128>}, {transform_indices = @transform_4, window_bounds = array<i64: 8, 128>}, {transform_indices = @transform_5, window_bounds = array<i64: 8, 128>}, {transform_indices = @transform_6, window_bounds = array<i64: 8, 128>}]} {
    %c0 = arith.constant 0 : index
    %c0_0 = arith.constant 0 : index
    %0 = vector.load %arg1[%c0, %c0_0] : memref<8x128xbf16, #tpu.memory_space<vmem>>, vector<8x128xbf16>
    %c0_1 = arith.constant 0 : index
    %c0_2 = arith.constant 0 : index
    %1 = vector.load %arg2[%c0_1, %c0_2] : memref<128x128xbf16, #tpu.memory_space<vmem>>, vector<128x128xbf16>
    %cst = arith.constant dense<0.000000e+00> : vector<8x128xf32>
    %2 = tpu.matmul %0, %1, %cst {dimension_numbers = #tpu.dot_dimension_numbers<[1], [0], [0], [1], [0, 0, 1, 1], [], []>} : vector<8x128xbf16>, vector<128x128xbf16>, vector<8x128xf32> -> vector<8x128xf32>
    %cst_3 = arith.constant 2.500000e-01 : f32
    %3 = vector.broadcast %cst_3 : f32 to vector<8x128xf32>
    %4 = arith.mulf %2, %3 : vector<8x128xf32>
    %5 = arith.truncf %4 : vector<8x128xf32> to vector<8x128xbf16>
    %c0_4 = arith.constant 0 : index
    %c0_5 = arith.constant 0 : index
    %6 = vector.load %arg5[%c0_4, %c0_5] : memref<8x128xbf16, #tpu.memory_space<vmem>>, vector<8x128xbf16>
    tpu.vector_store %arg5[%c0_4, %c0_5], %5 {strides = array<i32>} : memref<8x128xbf16, #tpu.memory_space<vmem>>, vector<8x128xbf16>,
    %c0_6 = arith.constant 0 : index
    %c0_7 = arith.constant 0 : index
    %7 = vector.load %arg3[%c0_6, %c0_7] : memref<128x128xbf16, #tpu.memory_space<vmem>>, vector<128x128xbf16>
    %cst_8 = arith.constant dense<0.000000e+00> : vector<8x128xf32>
    %8 = tpu.matmul %0, %7, %cst_8 {dimension_numbers = #tpu.dot_dimension_numbers<[1], [0], [0], [1], [0, 0, 1, 1], [], []>} : vector<8x128xbf16>, vector<128x128xbf16>, vector<8x128xf32> -> vector<8x128xf32>
    %9 = arith.truncf %8 : vector<8x128xf32> to vector<8x128xbf16>
    %c0_9 = arith.constant 0 : index
    %c0_10 = arith.constant 0 : index
    %10 = vector.load %arg6[%c0_9, %c0_10] : memref<8x128xbf16, #tpu.memory_space<vmem>>, vector<8x128xbf16>
    tpu.vector_store %arg6[%c0_9, %c0_10], %9 {strides = array<i32>} : memref<8x128xbf16, #tpu.memory_space<vmem>>, vector<8x128xbf16>,
    %c0_11 = arith.constant 0 : index
    %c0_12 = arith.constant 0 : index
    %11 = vector.load %arg4[%c0_11, %c0_12] : memref<128x128xbf16, #tpu.memory_space<vmem>>, vector<128x128xbf16>
    %cst_13 = arith.constant dense<0.000000e+00> : vector<8x128xf32>
    %12 = tpu.matmul %0, %11, %cst_13 {dimension_numbers = #tpu.dot_dimension_numbers<[1], [0], [0], [1], [0, 0, 1, 1], [], []>} : vector<8x128xbf16>, vector<128x128xbf16>, vector<8x128xf32> -> vector<8x128xf32>
    %13 = arith.truncf %12 : vector<8x128xf32> to vector<8x128xbf16>
    %c0_14 = arith.constant 0 : index
    %c0_15 = arith.constant 0 : index
    %14 = vector.load %arg7[%c0_14, %c0_15] : memref<8x128xbf16, #tpu.memory_space<vmem>>, vector<8x128xbf16>
    tpu.vector_store %arg7[%c0_14, %c0_15], %13 {strides = array<i32>} : memref<8x128xbf16, #tpu.memory_space<vmem>>, vector<8x128xbf16>,
    return
  }
  func.func @transform_0(%arg0: i32) -> (i32, i32) {
    %c0_i32 = arith.constant 0 : i32
    %c0_i32_0 = arith.constant 0 : i32
    return %arg0, %c0_i32 : i32, i32
  }
  func.func @transform_1(%arg0: i32) -> (i32, i32) {
    %c0_i32 = arith.constant 0 : i32
    %c0_i32_0 = arith.constant 0 : i32
    %c0_i32_1 = arith.constant 0 : i32
    return %c0_i32, %c0_i32_0 : i32, i32
  }
  func.func @transform_2(%arg0: i32) -> (i32, i32) {
    %c0_i32 = arith.constant 0 : i32
    %c0_i32_0 = arith.constant 0 : i32
    %c0_i32_1 = arith.constant 0 : i32
    return %c0_i32, %c0_i32_0 : i32, i32
  }
  func.func @transform_3(%arg0: i32) -> (i32, i32) {
    %c0_i32 = arith.constant 0 : i32
    %c0_i32_0 = arith.constant 0 : i32
    %c0_i32_1 = arith.constant 0 : i32
    return %c0_i32, %c0_i32_0 : i32, i32
  }
  func.func @transform_4(%arg0: i32) -> (i32, i32) {
    %c0_i32 = arith.constant 0 : i32
    %c0_i32_0 = arith.constant 0 : i32
    return %arg0, %c0_i32 : i32, i32
  }
  func.func @transform_5(%arg0: i32) -> (i32, i32) {
    %c0_i32 = arith.constant 0 : i32
    %c0_i32_0 = arith.constant 0 : i32
    return %arg0, %c0_i32 : i32, i32
  }
  func.func @transform_6(%arg0: i32) -> (i32, i32) {
    %c0_i32 = arith.constant 0 : i32
    %c0_i32_0 = arith.constant 0 : i32
    return %arg0, %c0_i32 : i32, i32
  }
}

</mosaic_0001>

<llo_original>
// kernel: tpu_custom_call.1
$region0: #{tpu_custom_call.1}
  #allocation0 [shape = 'u32[]', space=smem, size = 0x4, offset = 0x4, fixed_abs, tag = 'smem constant byte address 0x4 - core index']
  #allocation1 [shape = 'u32[144,128]{1,0:T(1,128)}', space=vmem, size = 0x12000, scoped, tag = 'internal scratch']
  %s0 = inlined_call_operand.hbm [shape: bf16[8,128], index: 0, kind: input, shape index: {}]
  %s1 = inlined_call_operand.hbm [shape: bf16[128,128], index: 1, kind: input, shape index: {}]
  %s2 = inlined_call_operand.hbm [shape: bf16[128,128], index: 2, kind: input, shape index: {}]
  %s3 = inlined_call_operand.hbm [shape: bf16[128,128], index: 3, kind: input, shape index: {}]
  %s4 = inlined_call_operand.hbm [shape: bf16[8,128], index: 4, kind: output, shape index: {0}]
  %s5 = inlined_call_operand.hbm [shape: bf16[8,128], index: 5, kind: output, shape index: {1}]
  %s6 = inlined_call_operand.hbm [shape: bf16[8,128], index: 6, kind: output, shape index: {2}]
  %7 = xla_tuple %s4, %s5, %s6
  %s8 = sld [smem:[#allocation0]]
  $region58: #{tpu_custom_call.1} parent=0
    _
  %s10 = ssub.s32 1, %s8
  %s11 = scalar_select 0, %s10, %s8
  $region1: #{tpu_custom_call.1} parent=0
    #allocation2 [shape = 'u8[2048]{0}', space=vmem, size = 0x800, scoped, tag = 'input window, operand 0, single buffered']
    #allocation3 [shape = 's32[1]{0}', space=sflag, size = 0x4, scoped, tag = 'scoped memory for tpu_custom_call.1']
    #allocation4 [shape = 's32[1]{0}', space=sflag, size = 0x4, scoped, tag = 'scoped memory for tpu_custom_call.1']
    #allocation5 [shape = 'u8[32768]{0}', space=vmem, size = 0x8000, scoped, tag = 'input window, operand 1, single buffered']
    #allocation6 [shape = 's32[1]{0}', space=sflag, size = 0x4, scoped, tag = 'scoped memory for tpu_custom_call.1']
    #allocation7 [shape = 'u8[32768]{0}', space=vmem, size = 0x8000, scoped, tag = 'input window, operand 2, single buffered']
    #allocation8 [shape = 'u8[32768]{0}', space=vmem, size = 0x8000, scoped, tag = 'input window, operand 3, single buffered']
    #allocation9 [shape = 's32[1]{0}', space=sflag, size = 0x4, scoped, tag = 'scoped memory for tpu_custom_call.1']
    #allocation10 [shape = 'u8[2048]{0}', space=vmem, size = 0x800, scoped, tag = 'output window, operand 0, single buffered']
    #allocation11 [shape = 'u8[2048]{0}', space=vmem, size = 0x800, scoped, tag = 'output window, operand 1, single buffered']
    #allocation12 [shape = 's32[1]{0}', space=sflag, size = 0x4, scoped, tag = 'scoped memory for tpu_custom_call.1']
    #allocation13 [shape = 'u8[2048]{0}', space=vmem, size = 0x800, scoped, tag = 'output window, operand 2, single buffered']
    %12 = vsyncpa [#allocation3], 0
    %13 = vsyncpa [#allocation6], 0
    %14 = vsyncpa [#allocation9], 0
    %15 = vsyncpa [#allocation4], 0
    %16 = vsyncpa [#allocation12], 0
    // Predicated region
    $region2: #{tpu_custom_call.1} parent=1 // pred_check
      _
    $region3: #{tpu_custom_call.1} parent=1 // pred_check_branch
      %18 = sbr.rel (0) target = $region5
    $region4: #{tpu_custom_call.1} parent=1 // pred_region
      %s20 = ssub.s32 64, 64
      %21 = vsyncadd [#allocation3], %s20
      %s23 = sshll.u32 [#allocation2], 4
      %s24 = int_to_ptr.vmem [resolvable:$true] %s23
      %26 = dma.hbm_to_vmem [thread:$0]  %s0, 64, %s24, [#allocation3]
    $region5: #{tpu_custom_call.1} parent=1 // pred_fallthru
      _
    // Predicated region
    $region6: #{tpu_custom_call.1} parent=1 // pred_check
      _
    $region7: #{tpu_custom_call.1} parent=1 // pred_check_branch
      %28 = sbr.rel (0) target = $region9
    $region8: #{tpu_custom_call.1} parent=1 // pred_region
      %s30 = ssub.s32 1024, 1024
      %31 = vsyncadd [#allocation6], %s30
      %s32 = sshll.u32 [#allocation5], 4
      %s33 = int_to_ptr.vmem [resolvable:$true] %s32
      %38 = dma.hbm_to_vmem [thread:$0]  %s1, 1024, %s33, [#allocation6], 64, 64, 4
    $region9: #{tpu_custom_call.1} parent=1 // pred_fallthru
      _
    // Predicated region
    $region10: #{tpu_custom_call.1} parent=1 // pred_check
      _
    $region11: #{tpu_custom_call.1} parent=1 // pred_check_branch
      %40 = sbr.rel (0) target = $region13
    $region12: #{tpu_custom_call.1} parent=1 // pred_region
      %s42 = ssub.s32 1024, 1024
      %43 = vsyncadd [#allocation6], %s42
      %s44 = sshll.u32 [#allocation7], 4
      %s45 = int_to_ptr.vmem [resolvable:$true] %s44
      %50 = dma.hbm_to_vmem [thread:$0]  %s2, 1024, %s45, [#allocation6], 64, 64, 4
    $region13: #{tpu_custom_call.1} parent=1 // pred_fallthru
      _
    // Predicated region
    $region14: #{tpu_custom_call.1} parent=1 // pred_check
      _
    $region15: #{tpu_custom_call.1} parent=1 // pred_check_branch
      %52 = sbr.rel (0) target = $region17
    $region16: #{tpu_custom_call.1} parent=1 // pred_region
      %s54 = ssub.s32 1024, 1024
      %55 = vsyncadd [#allocation9], %s54
      %s56 = sshll.u32 [#allocation8], 4
      %s57 = int_to_ptr.vmem [resolvable:$true] %s56
      %62 = dma.hbm_to_vmem [thread:$0]  %s3, 1024, %s57, [#allocation9], 64, 64, 4
    $region17: #{tpu_custom_call.1} parent=1 // pred_fallthru
      _
    // Predicated region
    $region18: #{tpu_custom_call.1} parent=1 // pred_check
      _
    $region19: #{tpu_custom_call.1} parent=1 // pred_check_branch
      %64 = sbr.rel (0) target = $region21
    $region20: #{tpu_custom_call.1} parent=1 // pred_region
      %65 = dma.done [#allocation3], 64
    $region21: #{tpu_custom_call.1} parent=1 // pred_fallthru
      _
    // Predicated region
    $region22: #{tpu_custom_call.1} parent=1 // pred_check
      _
    $region23: #{tpu_custom_call.1} parent=1 // pred_check_branch
      %67 = sbr.rel (0) target = $region25
    $region24: #{tpu_custom_call.1} parent=1 // pred_region
      %68 = dma.done [#allocation6], 1024
    $region25: #{tpu_custom_call.1} parent=1 // pred_fallthru
      _
    // Predicated region
    $region26: #{tpu_custom_call.1} parent=1 // pred_check
      _
    $region27: #{tpu_custom_call.1} parent=1 // pred_check_branch
      %70 = sbr.rel (0) target = $region29
    $region28: #{tpu_custom_call.1} parent=1 // pred_region
      %71 = dma.done [#allocation6], 1024
    $region29: #{tpu_custom_call.1} parent=1 // pred_fallthru
      _
    // Predicated region
    $region30: #{tpu_custom_call.1} parent=1 // pred_check
      _
    $region31: #{tpu_custom_call.1} parent=1 // pred_check_branch
      %73 = sbr.rel (0) target = $region33
    $region32: #{tpu_custom_call.1} parent=1 // pred_region
      %74 = dma.done [#allocation9], 1024
    $region33: #{tpu_custom_call.1} parent=1 // pred_fallthru
      _
    %v76 = vld [vmem:[#allocation2] sm:$0xf]
    %v77 = vld [vmem:[#allocation5] sm:$0xf]
    %v78 = vld [vmem:[#allocation5 + $0x4] sm:$0xf]
    %v79 = vld [vmem:[#allocation5 + $0x8] sm:$0xf]
    %v80 = vld [vmem:[#allocation5 + $0xc] sm:$0xf]
    %v81 = vld [vmem:[#allocation5 + $0x10] sm:$0xf]
    %v82 = vld [vmem:[#allocation5 + $0x14] sm:$0xf]
    %v83 = vld [vmem:[#allocation5 + $0x18] sm:$0xf]
    %v84 = vld [vmem:[#allocation5 + $0x1c] sm:$0xf]
    %v85 = vld [vmem:[#allocation5 + $0x20] sm:$0xf]
    %v86 = vld [vmem:[#allocation5 + $0x24] sm:$0xf]
    %v87 = vld [vmem:[#allocation5 + $0x28] sm:$0xf]
    %v88 = vld [vmem:[#allocation5 + $0x2c] sm:$0xf]
    %v89 = vld [vmem:[#allocation5 + $0x30] sm:$0xf]
    %v90 = vld [vmem:[#allocation5 + $0x34] sm:$0xf]
    %v91 = vld [vmem:[#allocation5 + $0x38] sm:$0xf]
    %v92 = vld [vmem:[#allocation5 + $0x3c] sm:$0xf]
    %v109 = vunpack.c.l.b16 %v77
    %v110 = vunpack.c.l.b16 %v78
    %v111 = vunpack.c.l.b16 %v79
    %v112 = vunpack.c.l.b16 %v80
    %v113 = vunpack.c.l.b16 %v81
    %v114 = vunpack.c.l.b16 %v82
    %v115 = vunpack.c.l.b16 %v83
    %v116 = vunpack.c.l.b16 %v84
    %v117 = vunpack.c.l.b16 %v85
    %v118 = vunpack.c.l.b16 %v86
    %v119 = vunpack.c.l.b16 %v87
    %v120 = vunpack.c.l.b16 %v88
    %v121 = vunpack.c.l.b16 %v89
    %v122 = vunpack.c.l.b16 %v90
    %v123 = vunpack.c.l.b16 %v91
    %v124 = vunpack.c.l.b16 %v92
    %v125 = vpack.c.b16 %v110, %v109
    %v126 = vpack.c.b16 %v112, %v111
    %v127 = vpack.c.b16 %v114, %v113
    %v128 = vpack.c.b16 %v116, %v115
    %v129 = vpack.c.b16 %v118, %v117
    %v130 = vpack.c.b16 %v120, %v119
    %v131 = vpack.c.b16 %v122, %v121
    %v132 = vpack.c.b16 %v124, %v123
    %141 = vmatprep.subr.bf16.mxu0 0
    %142 = vmatpush1.bf16.msra.mxu0 %v132
    %143 = vmatprep.subr.bf16.mxu0 0
    %144 = vmatpush1.bf16.msra.mxu0 %v131
    %145 = vmatprep.subr.bf16.mxu0 0
    %146 = vmatpush1.bf16.msra.mxu0 %v130
    %147 = vmatprep.subr.bf16.mxu0 0
    %148 = vmatpush1.bf16.msra.mxu0 %v129
    %149 = vmatprep.subr.bf16.mxu0 0
    %150 = vmatpush1.bf16.msra.mxu0 %v128
    %151 = vmatprep.subr.bf16.mxu0 0
    %152 = vmatpush1.bf16.msra.mxu0 %v127
    %153 = vmatprep.subr.bf16.mxu0 0
    %154 = vmatpush1.bf16.msra.mxu0 %v126
    %155 = vmatprep.subr.bf16.mxu0 0
    %156 = vmatpush1.bf16.msra.mxu0 %v125
    %157 = vmatprep.subr.bf16.mxu0 0
    %158 = vmatpush2.bf16.msra.mxu0 0
    %159 = vmatprep.subr.bf16.mxu0 0
    %160 = vmatpush2.bf16.msra.mxu0 0
    %161 = vmatprep.subr.bf16.mxu0 0
    %162 = vmatpush2.bf16.msra.mxu0 0
    %163 = vmatprep.subr.bf16.mxu0 0
    %164 = vmatpush2.bf16.msra.mxu0 0
    %165 = vmatprep.subr.bf16.mxu0 0
    %166 = vmatpush2.bf16.msra.mxu0 0
    %167 = vmatprep.subr.bf16.mxu0 0
    %168 = vmatpush2.bf16.msra.mxu0 0
    %169 = vmatprep.subr.bf16.mxu0 0
    %170 = vmatpush2.bf16.msra.mxu0 0
    %171 = vmatprep.subr.bf16.mxu0 0
    %172 = vmatpush2.bf16.msra.mxu0 0
    %173 = vmatprep.mubr.bf16.mxu0 0
    %174 = vmatmul.mubr.bf16.gmra.mxu0 %v76
    %v175 = vpop.f32.mrf.mxu0
    %v176 = vadd.f32 0.0, %v175
    %v177 = vpop.f32.mrf.mxu0
    %v178 = vpop.f32.mrf.mxu0
    %v179 = vpop.f32.mrf.mxu0
    %180 = vdwg.mxu0
    %v181 = vmul.f32 %v176, 0.25
    %v182 = vpack.c.bf16 %v181, %v181
    %183 = vst [vmem:[#allocation10] sm:$0xf] %v182
    %v184 = vld [vmem:[#allocation7] sm:$0xf]
    %v185 = vld [vmem:[#allocation7 + $0x4] sm:$0xf]
    %v186 = vld [vmem:[#allocation7 + $0x8] sm:$0xf]
    %v187 = vld [vmem:[#allocation7 + $0xc] sm:$0xf]
    %v188 = vld [vmem:[#allocation7 + $0x10] sm:$0xf]
    %v189 = vld [vmem:[#allocation7 + $0x14] sm:$0xf]
    %v190 = vld [vmem:[#allocation7 + $0x18] sm:$0xf]
    %v191 = vld [vmem:[#allocation7 + $0x1c] sm:$0xf]
    %v192 = vld [vmem:[#allocation7 + $0x20] sm:$0xf]
    %v193 = vld [vmem:[#allocation7 + $0x24] sm:$0xf]
    %v194 = vld [vmem:[#allocation7 + $0x28] sm:$0xf]
    %v195 = vld [vmem:[#allocation7 + $0x2c] sm:$0xf]
    %v196 = vld [vmem:[#allocation7 + $0x30] sm:$0xf]
    %v197 = vld [vmem:[#allocation7 + $0x34] sm:$0xf]
    %v198 = vld [vmem:[#allocation7 + $0x38] sm:$0xf]
    %v199 = vld [vmem:[#allocation7 + $0x3c] sm:$0xf]
    %v216 = vunpack.c.l.b16 %v184
    %v217 = vunpack.c.l.b16 %v185
    %v218 = vunpack.c.l.b16 %v186
    %v219 = vunpack.c.l.b16 %v187
    %v220 = vunpack.c.l.b16 %v188
    %v221 = vunpack.c.l.b16 %v189
    %v222 = vunpack.c.l.b16 %v190
    %v223 = vunpack.c.l.b16 %v191
    %v224 = vunpack.c.l.b16 %v192
    %v225 = vunpack.c.l.b16 %v193
    %v226 = vunpack.c.l.b16 %v194
    %v227 = vunpack.c.l.b16 %v195
    %v228 = vunpack.c.l.b16 %v196
    %v229 = vunpack.c.l.b16 %v197
    %v230 = vunpack.c.l.b16 %v198
    %v231 = vunpack.c.l.b16 %v199
    %v232 = vpack.c.b16 %v217, %v216
    %v233 = vpack.c.b16 %v219, %v218
    %v234 = vpack.c.b16 %v221, %v220
    %v235 = vpack.c.b16 %v223, %v222
    %v236 = vpack.c.b16 %v225, %v224
    %v237 = vpack.c.b16 %v227, %v226
    %v238 = vpack.c.b16 %v229, %v228
    %v239 = vpack.c.b16 %v231, %v230
    %248 = vmatprep.subr.bf16.mxu0 0
    %249 = vmatpush1.bf16.msra.mxu0 %v239
    %250 = vmatprep.subr.bf16.mxu0 0
    %251 = vmatpush1.bf16.msra.mxu0 %v238
    %252 = vmatprep.subr.bf16.mxu0 0
    %253 = vmatpush1.bf16.msra.mxu0 %v237
    %254 = vmatprep.subr.bf16.mxu0 0
    %255 = vmatpush1.bf16.msra.mxu0 %v236
    %256 = vmatprep.subr.bf16.mxu0 0
    %257 = vmatpush1.bf16.msra.mxu0 %v235
    %258 = vmatprep.subr.bf16.mxu0 0
    %259 = vmatpush1.bf16.msra.mxu0 %v234
    %260 = vmatprep.subr.bf16.mxu0 0
    %261 = vmatpush1.bf16.msra.mxu0 %v233
    %262 = vmatprep.subr.bf16.mxu0 0
    %263 = vmatpush1.bf16.msra.mxu0 %v232
    %264 = vmatprep.subr.bf16.mxu0 0
    %265 = vmatpush2.bf16.msra.mxu0 0
    %266 = vmatprep.subr.bf16.mxu0 0
    %267 = vmatpush2.bf16.msra.mxu0 0
    %268 = vmatprep.subr.bf16.mxu0 0
    %269 = vmatpush2.bf16.msra.mxu0 0
    %270 = vmatprep.subr.bf16.mxu0 0
    %271 = vmatpush2.bf16.msra.mxu0 0
    %272 = vmatprep.subr.bf16.mxu0 0
    %273 = vmatpush2.bf16.msra.mxu0 0
    %274 = vmatprep.subr.bf16.mxu0 0
    %275 = vmatpush2.bf16.msra.mxu0 0
    %276 = vmatprep.subr.bf16.mxu0 0
    %277 = vmatpush2.bf16.msra.mxu0 0
    %278 = vmatprep.subr.bf16.mxu0 0
    %279 = vmatpush2.bf16.msra.mxu0 0
    %280 = vmatprep.mubr.bf16.mxu0 0
    %281 = vmatmul.mubr.bf16.gmra.mxu0 %v76
    %v282 = vpop.f32.mrf.mxu0
    %v283 = vadd.f32 0.0, %v282
    %v284 = vpop.f32.mrf.mxu0
    %v285 = vpop.f32.mrf.mxu0
    %v286 = vpop.f32.mrf.mxu0
    %287 = vdwg.mxu0
    %v288 = vpack.c.bf16 %v283, %v283
    %289 = vst [vmem:[#allocation11] sm:$0xf] %v288
    %v290 = vld [vmem:[#allocation8] sm:$0xf]
    %v291 = vld [vmem:[#allocation8 + $0x4] sm:$0xf]
    %v292 = vld [vmem:[#allocation8 + $0x8] sm:$0xf]
    %v293 = vld [vmem:[#allocation8 + $0xc] sm:$0xf]
    %v294 = vld [vmem:[#allocation8 + $0x10] sm:$0xf]
    %v295 = vld [vmem:[#allocation8 + $0x14] sm:$0xf]
    %v296 = vld [vmem:[#allocation8 + $0x18] sm:$0xf]
    %v297 = vld [vmem:[#allocation8 + $0x1c] sm:$0xf]
    %v298 = vld [vmem:[#allocation8 + $0x20] sm:$0xf]
    %v299 = vld [vmem:[#allocation8 + $0x24] sm:$0xf]
    %v300 = vld [vmem:[#allocation8 + $0x28] sm:$0xf]
    %v301 = vld [vmem:[#allocation8 + $0x2c] sm:$0xf]
    %v302 = vld [vmem:[#allocation8 + $0x30] sm:$0xf]
    %v303 = vld [vmem:[#allocation8 + $0x34] sm:$0xf]
    %v304 = vld [vmem:[#allocation8 + $0x38] sm:$0xf]
    %v305 = vld [vmem:[#allocation8 + $0x3c] sm:$0xf]
    %v322 = vunpack.c.l.b16 %v290
    %v323 = vunpack.c.l.b16 %v291
    %v324 = vunpack.c.l.b16 %v292
    %v325 = vunpack.c.l.b16 %v293
    %v326 = vunpack.c.l.b16 %v294
    %v327 = vunpack.c.l.b16 %v295
    %v328 = vunpack.c.l.b16 %v296
    %v329 = vunpack.c.l.b16 %v297
    %v330 = vunpack.c.l.b16 %v298
    %v331 = vunpack.c.l.b16 %v299
    %v332 = vunpack.c.l.b16 %v300
    %v333 = vunpack.c.l.b16 %v301
    %v334 = vunpack.c.l.b16 %v302
    %v335 = vunpack.c.l.b16 %v303
    %v336 = vunpack.c.l.b16 %v304
    %v337 = vunpack.c.l.b16 %v305
    %v338 = vpack.c.b16 %v323, %v322
    %v339 = vpack.c.b16 %v325, %v324
    %v340 = vpack.c.b16 %v327, %v326
    %v341 = vpack.c.b16 %v329, %v328
    %v342 = vpack.c.b16 %v331, %v330
    %v343 = vpack.c.b16 %v333, %v332
    %v344 = vpack.c.b16 %v335, %v334
    %v345 = vpack.c.b16 %v337, %v336
    %354 = vmatprep.subr.bf16.mxu0 0
    %355 = vmatpush1.bf16.msra.mxu0 %v345
    %356 = vmatprep.subr.bf16.mxu0 0
    %357 = vmatpush1.bf16.msra.mxu0 %v344
    %358 = vmatprep.subr.bf16.mxu0 0
    %359 = vmatpush1.bf16.msra.mxu0 %v343
    %360 = vmatprep.subr.bf16.mxu0 0
    %361 = vmatpush1.bf16.msra.mxu0 %v342
    %362 = vmatprep.subr.bf16.mxu0 0
    %363 = vmatpush1.bf16.msra.mxu0 %v341
    %364 = vmatprep.subr.bf16.mxu0 0
    %365 = vmatpush1.bf16.msra.mxu0 %v340
    %366 = vmatprep.subr.bf16.mxu0 0
    %367 = vmatpush1.bf16.msra.mxu0 %v339
    %368 = vmatprep.subr.bf16.mxu0 0
    %369 = vmatpush1.bf16.msra.mxu0 %v338
    %370 = vmatprep.subr.bf16.mxu0 0
    %371 = vmatpush2.bf16.msra.mxu0 0
    %372 = vmatprep.subr.bf16.mxu0 0
    %373 = vmatpush2.bf16.msra.mxu0 0
    %374 = vmatprep.subr.bf16.mxu0 0
    %375 = vmatpush2.bf16.msra.mxu0 0
    %376 = vmatprep.subr.bf16.mxu0 0
    %377 = vmatpush2.bf16.msra.mxu0 0
    %378 = vmatprep.subr.bf16.mxu0 0
    %379 = vmatpush2.bf16.msra.mxu0 0
    %380 = vmatprep.subr.bf16.mxu0 0
    %381 = vmatpush2.bf16.msra.mxu0 0
    %382 = vmatprep.subr.bf16.mxu0 0
    %383 = vmatpush2.bf16.msra.mxu0 0
    %384 = vmatprep.subr.bf16.mxu0 0
    %385 = vmatpush2.bf16.msra.mxu0 0
    %386 = vmatprep.mubr.bf16.mxu0 0
    %387 = vmatmul.mubr.bf16.gmra.mxu0 %v76
    %v388 = vpop.f32.mrf.mxu0
    %v389 = vadd.f32 0.0, %v388
    %v390 = vpop.f32.mrf.mxu0
    %v391 = vpop.f32.mrf.mxu0
    %v392 = vpop.f32.mrf.mxu0
    %393 = vdwg.mxu0
    %v394 = vpack.c.bf16 %v389, %v389
    %395 = vst [vmem:[#allocation13] sm:$0xf] %v394
    // Predicated region
    $region34: #{tpu_custom_call.1} parent=1 // pred_check
      _
    $region35: #{tpu_custom_call.1} parent=1 // pred_check_branch
      %397 = sbr.rel (0) target = $region37
    $region36: #{tpu_custom_call.1} parent=1 // pred_region
      %s399 = ssub.s32 64, 64
      %400 = vsyncadd [#allocation4], %s399
      %s402 = sshll.u32 [#allocation10], 4
      %s403 = int_to_ptr.vmem [resolvable:$true] %s402
      %405 = dma.vmem_to_hbm [thread:$0]  %s403, 64, %s4, [#allocation4]
    $region37: #{tpu_custom_call.1} parent=1 // pred_fallthru
      _
    // Predicated region
    $region38: #{tpu_custom_call.1} parent=1 // pred_check
      _
    $region39: #{tpu_custom_call.1} parent=1 // pred_check_branch
      %407 = sbr.rel (0) target = $region41
    $region40: #{tpu_custom_call.1} parent=1 // pred_region
      %s409 = ssub.s32 64, 64
      %410 = vsyncadd [#allocation12], %s409
      %s412 = sshll.u32 [#allocation11], 4
      %s413 = int_to_ptr.vmem [resolvable:$true] %s412
      %415 = dma.vmem_to_hbm [thread:$0]  %s413, 64, %s5, [#allocation12]
    $region41: #{tpu_custom_call.1} parent=1 // pred_fallthru
      _
    // Predicated region
    $region42: #{tpu_custom_call.1} parent=1 // pred_check
      _
    $region43: #{tpu_custom_call.1} parent=1 // pred_check_branch
      %417 = sbr.rel (0) target = $region45
    $region44: #{tpu_custom_call.1} parent=1 // pred_region
      %s419 = ssub.s32 64, 64
      %420 = vsyncadd [#allocation12], %s419
      %s422 = sshll.u32 [#allocation13], 4
      %s423 = int_to_ptr.vmem [resolvable:$true] %s422
      %425 = dma.vmem_to_hbm [thread:$0]  %s423, 64, %s6, [#allocation12]
    $region45: #{tpu_custom_call.1} parent=1 // pred_fallthru
      _
    // Predicated region
    $region46: #{tpu_custom_call.1} parent=1 // pred_check
      _
    $region47: #{tpu_custom_call.1} parent=1 // pred_check_branch
      %427 = sbr.rel (0) target = $region49
    $region48: #{tpu_custom_call.1} parent=1 // pred_region
      %428 = dma.done [#allocation4], 64
    $region49: #{tpu_custom_call.1} parent=1 // pred_fallthru
      _
    // Predicated region
    $region50: #{tpu_custom_call.1} parent=1 // pred_check
      _
    $region51: #{tpu_custom_call.1} parent=1 // pred_check_branch
      %430 = sbr.rel (0) target = $region53
    $region52: #{tpu_custom_call.1} parent=1 // pred_region
      %431 = dma.done [#allocation12], 64
    $region53: #{tpu_custom_call.1} parent=1 // pred_fallthru
      _
    // Predicated region
    $region54: #{tpu_custom_call.1} parent=1 // pred_check
      _
    $region55: #{tpu_custom_call.1} parent=1 // pred_check_branch
      %433 = sbr.rel (0) target = $region57
    $region56: #{tpu_custom_call.1} parent=1 // pred_region
      %434 = dma.done [#allocation12], 64
    $region57: #{tpu_custom_call.1} parent=1 // pred_fallthru
      _
    %435 = vsyncpa [#allocation3], 1
    %436 = vsyncpa [#allocation6], 1
    %437 = vsyncpa [#allocation9], 1
    %438 = vsyncpa [#allocation4], 1
    %439 = vsyncpa [#allocation12], 1

</llo_original>
